<compile_context>
chip_gen: v7x
topology: tpu7x:2x2x1
jax: 0.10.0
libtpu: 0.0.40
codegen_flags: <defaults>
</compile_context>

<pallas_src>
import jax
import jax.numpy as jnp
from jax.experimental import pallas as pl
from jax.experimental.pallas import tpu as pltpu

LANE = 128


def _round_up(n, m=LANE):
    return ((n + m - 1) // m) * m


def _pad2(a, rows, cols):
    """Zero-pad a 2D array up to (rows, cols)."""
    r, c = a.shape
    if r == rows and c == cols:
        return a
    return jnp.pad(a, ((0, rows - r), (0, cols - c)))


def init_sentiment_params(emb_table, pool_w, pool_b, w1, b1, w2, b2, w3, b3, num_classes):
    """One-time packing (NOT per-forward): pad every feature dim to a common lane-dense Dmax,
    stack the four layer weights into one (4, Dmax, Dmax) array and the four biases into one
    (4, 1, Dmax) array, and pad the embedding-table columns so the CLS gather is already
    lane-dense.  The fused kernel then needs only 3 operand DMAs (x, W, B)."""
    H = pool_w.shape[0]
    Dmax = max(_round_up(d) for d in (H, w1.shape[1], w2.shape[1], num_classes))

    def pw(w):
        return _pad2(w.astype(jnp.float32), Dmax, Dmax)

    def pb(b):
        return _pad2(b.reshape(1, -1).astype(jnp.float32), 1, Dmax)

    # TODO(synk): at real BERT scale (H=768) store W/B in bfloat16 (keep f32 dot accumulation)
    # for v6e/v7x MXU throughput and VMEM headroom; kept f32 here so the small-shape check is exact.
    W = jnp.stack([pw(pool_w), pw(w1), pw(w2), pw(w3)])                      # (4, Dmax, Dmax)
    Bst = jnp.stack([pb(pool_b), pb(b1), pb(b2), pb(b3)])                    # (4, 1, Dmax)
    emb_p = _pad2(emb_table.astype(jnp.float32), emb_table.shape[0], Dmax)   # (V, Dmax)
    return {"W": W, "B": Bst, "emb": emb_p, "Dmax": Dmax, "num_classes": num_classes}


def fused_head_kernel(x_ref, w_ref, b_ref, out_ref):
    """BERT pooler (dense+tanh) fused with fc->lrelu->fc2->lrelu->fc_out, f32 accumulation.

    All feature dims are pre-padded to a common 128-lane Dmax; padded lanes stay exactly zero
    through tanh / leaky_relu (f(0)=0), zero-padded weight rows/cols and zero biases, so the
    real-lane results are unchanged.
    """
    neg = jnp.float32(0.01)  # F.leaky_relu default slope
    x = x_ref[...]                                                            # (TB, Dmax) f32

    # BERT pooler: dense + tanh on the CLS-token representation.
    h = jnp.tanh(jnp.dot(x, w_ref[0], preferred_element_type=jnp.float32) + b_ref[0])

    # dropout / dropout2 / dropout3 are identity in eval mode (no RNG mask here).
    h = jnp.dot(h, w_ref[1], preferred_element_type=jnp.float32) + b_ref[1]
    h = jnp.where(h > 0, h, neg * h)

    h = jnp.dot(h, w_ref[2], preferred_element_type=jnp.float32) + b_ref[2]
    h = jnp.where(h > 0, h, neg * h)

    out = jnp.dot(h, w_ref[3], preferred_element_type=jnp.float32) + b_ref[3]
    out_ref[...] = out.astype(out_ref.dtype)   # lane-dense (TB, Dmax) store (unmasked vst)


def sentiment_forward(params, input_ids, attention_mask):
    """Gathers only the CLS-token embedding, runs the fused kernel, slices out real logits."""
    W, Bst, emb = params["W"], params["B"], params["emb"]
    Dmax, C = params["Dmax"], params["num_classes"]
    Bsz = input_ids.shape[0]

    # Synthetic BERT backbone stand-in: embed ONLY token 0 (CLS) -- no full [B,S,H] gather --
    # and keep just token-0's attention-mask semantics.
    # TODO(synk): the pretrained multi-layer BERT encoder is not reproduced; the CLS gather could
    # additionally be fused into the kernel via scalar-prefetched ids + in-kernel row loads.
    cls_tok = jnp.take(emb, input_ids[:, 0], axis=0)                          # (B, Dmax), lane-dense
    cls_tok = cls_tok * attention_mask[:, 0:1].astype(cls_tok.dtype)

    # Batch grid: weights/biases use constant index_maps so their blocks stay VMEM-resident
    # across batch tiles; "parallel" lets v7x's two TensorCores split the batch once B >= 2*TB,
    # and bounds VMEM to weights + one (TB, Dmax) tile regardless of B.
    TB = Bsz if Bsz <= 512 else 512
    assert Bsz % TB == 0, "demo wrapper keeps the batch a multiple of the batch tile"

    out_p = pl.pallas_call(
        fused_head_kernel,
        out_shape=jax.ShapeDtypeStruct((Bsz, Dmax), jnp.float32),
        grid_spec=pltpu.PrefetchScalarGridSpec(
            num_scalar_prefetch=0,
            grid=(Bsz // TB,),
            in_specs=[
                pl.BlockSpec((TB, Dmax), lambda i: (i, 0)),
                pl.BlockSpec((4, Dmax, Dmax), lambda i: (0, 0, 0)),  # resident across batch tiles
                pl.BlockSpec((4, 1, Dmax), lambda i: (0, 0, 0)),
            ],
            out_specs=pl.BlockSpec((TB, Dmax), lambda i: (i, 0)),
        ),
        compiler_params=pltpu.CompilerParams(dimension_semantics=("parallel",)),
    )(cls_tok, W, Bst)
    return out_p[:, :C]


if __name__ == "__main__":
    # Small, deterministic config
    B, S = 8, 8          # batch, sequence length
    VOCAB = 64
    HIDDEN = 32          # bert hidden_size
    N1, N2 = 64, 32      # neurons_capa_1, neurons_capa_2
    NUM_CLASSES = 3

    key = jax.random.PRNGKey(0)
    keys = jax.random.split(key, 12)

    # Inputs
    input_ids = jax.random.randint(keys[0], (B, S), 0, VOCAB, dtype=jnp.int32)
    attention_mask = jnp.ones((B, S), dtype=jnp.int32)

    # Synthetic "BERT" parameters
    emb_table = jax.random.normal(keys[1], (VOCAB, HIDDEN), dtype=jnp.float32) * 0.02
    pool_w = jax.random.normal(keys[2], (HIDDEN, HIDDEN), dtype=jnp.float32) * 0.02
    pool_b = jax.random.normal(keys[9], (HIDDEN,), dtype=jnp.float32) * 0.01

    # Classification head parameters (stored (in, out); biases 1D)
    w1 = jax.random.normal(keys[3], (HIDDEN, N1), dtype=jnp.float32) * 0.05
    b1 = jax.random.normal(keys[4], (N1,), dtype=jnp.float32) * 0.01
    w2 = jax.random.normal(keys[5], (N1, N2), dtype=jnp.float32) * 0.05
    b2 = jax.random.normal(keys[6], (N2,), dtype=jnp.float32) * 0.01
    w3 = jax.random.normal(keys[7], (N2, NUM_CLASSES), dtype=jnp.float32) * 0.05
    b3 = jax.random.normal(keys[8], (NUM_CLASSES,), dtype=jnp.float32) * 0.01

    # One-time parameter packing (padding/stacking hoisted out of the per-call forward).
    params = init_sentiment_params(
        emb_table, pool_w, pool_b, w1, b1, w2, b2, w3, b3, NUM_CLASSES)
    jax.block_until_ready(params["W"])

    # Forward: minimal CLS gather in JAX, pooler + head fused in one Pallas kernel
    logits = sentiment_forward(params, input_ids, attention_mask)
    logits = jax.block_until_ready(logits)

    # Pure-JAX reference check (unpadded math)
    def lrelu(x):
        return jnp.where(x > 0, x, 0.01 * x)

    first_tok = jnp.take(emb_table, input_ids[:, 0], axis=0)
    first_tok = first_tok * attention_mask[:, 0:1].astype(jnp.float32)
    cls_ref = jnp.tanh(first_tok @ pool_w + pool_b[None, :])
    ref = lrelu(cls_ref @ w1 + b1[None, :])
    ref = lrelu(ref @ w2 + b2[None, :])
    ref = ref @ w3 + b3[None, :]

    assert logits.shape == (B, NUM_CLASSES)
    assert jnp.allclose(logits, ref, atol=1e-5, rtol=1e-5)

    print("KERNEL_OK")
</pallas_src>

<mosaic_0001>
module attributes {stable_mosaic.version = 11 : i64} {
  func.func @fused_head_kernel(%arg0: i32, %arg1: memref<8x128xf32, #tpu.memory_space<vmem>>, %arg2: memref<4x128x128xf32, #tpu.memory_space<vmem>>, %arg3: memref<4x1x128xf32, #tpu.memory_space<vmem>>, %arg4: memref<8x128xf32, #tpu.memory_space<vmem>>) attributes {dimension_semantics = [#tpu.dimension_semantics<parallel>], iteration_bounds = array<i64: 1>, scalar_prefetch = 0 : i64, scratch_operands = 0 : i64, tpu.core_type = #tpu.core_type<tc>, window_params = [{transform_indices = @transform_0, window_bounds = array<i64: 8, 128>}, {pipeline_mode = #tpu.pipeline_mode<synchronous>, transform_indices = @transform_1, window_bounds = array<i64: 4, 128, 128>}, {pipeline_mode = #tpu.pipeline_mode<synchronous>, transform_indices = @transform_2, window_bounds = array<i64: 4, 1, 128>}, {transform_indices = @transform_3, window_bounds = array<i64: 8, 128>}]} {
    %c0 = arith.constant 0 : index
    %c0_0 = arith.constant 0 : index
    %0 = vector.load %arg1[%c0, %c0_0] : memref<8x128xf32, #tpu.memory_space<vmem>>, vector<8x128xf32>
    %c0_1 = arith.constant 0 : index
    %c0_2 = arith.constant 0 : index
    %c0_3 = arith.constant 0 : index
    %1 = vector.load %arg2[%c0_1, %c0_2, %c0_3] : memref<4x128x128xf32, #tpu.memory_space<vmem>>, vector<1x128x128xf32>
    %2 = vector.shape_cast %1 : vector<1x128x128xf32> to vector<128x128xf32>
    %cst = arith.constant dense<0.000000e+00> : vector<8x128xf32>
    %3 = tpu.matmul %0, %2, %cst {dimension_numbers = #tpu.dot_dimension_numbers<[1], [0], [0], [1], [0, 0, 1, 1], [], []>} : vector<8x128xf32>, vector<128x128xf32>, vector<8x128xf32> -> vector<8x128xf32>
    %c0_4 = arith.constant 0 : index
    %c0_5 = arith.constant 0 : index
    %c0_6 = arith.constant 0 : index
    %4 = vector.load %arg3[%c0_4, %c0_5, %c0_6] : memref<4x1x128xf32, #tpu.memory_space<vmem>>, vector<1x1x128xf32>
    %5 = vector.shape_cast %4 : vector<1x1x128xf32> to vector<1x128xf32>
    %6 = vector.broadcast %5 : vector<1x128xf32> to vector<8x128xf32>
    %7 = arith.addf %3, %6 : vector<8x128xf32>
    %8 = math.tanh %7 : vector<8x128xf32>
    %c1 = arith.constant 1 : index
    %c0_7 = arith.constant 0 : index
    %c0_8 = arith.constant 0 : index
    %9 = vector.load %arg2[%c1, %c0_7, %c0_8] : memref<4x128x128xf32, #tpu.memory_space<vmem>>, vector<1x128x128xf32>
    %10 = vector.shape_cast %9 : vector<1x128x128xf32> to vector<128x128xf32>
    %cst_9 = arith.constant dense<0.000000e+00> : vector<8x128xf32>
    %11 = tpu.matmul %8, %10, %cst_9 {dimension_numbers = #tpu.dot_dimension_numbers<[1], [0], [0], [1], [0, 0, 1, 1], [], []>} : vector<8x128xf32>, vector<128x128xf32>, vector<8x128xf32> -> vector<8x128xf32>
    %c1_10 = arith.constant 1 : index
    %c0_11 = arith.constant 0 : index
    %c0_12 = arith.constant 0 : index
    %12 = vector.load %arg3[%c1_10, %c0_11, %c0_12] : memref<4x1x128xf32, #tpu.memory_space<vmem>>, vector<1x1x128xf32>
    %13 = vector.shape_cast %12 : vector<1x1x128xf32> to vector<1x128xf32>
    %14 = vector.broadcast %13 : vector<1x128xf32> to vector<8x128xf32>
    %15 = arith.addf %11, %14 : vector<8x128xf32>
    %cst_13 = arith.constant 0.000000e+00 : f32
    %16 = vector.broadcast %cst_13 : f32 to vector<8x128xf32>
    %17 = arith.cmpf ogt, %15, %16 : vector<8x128xf32>
    %cst_14 = arith.constant 0.00999999977 : f32
    %18 = vector.broadcast %cst_14 : f32 to vector<8x128xf32>
    %19 = arith.mulf %18, %15 : vector<8x128xf32>
    %20 = arith.select %17, %15, %19 : vector<8x128xi1>, vector<8x128xf32>
    %c2 = arith.constant 2 : index
    %c0_15 = arith.constant 0 : index
    %c0_16 = arith.constant 0 : index
    %21 = vector.load %arg2[%c2, %c0_15, %c0_16] : memref<4x128x128xf32, #tpu.memory_space<vmem>>, vector<1x128x128xf32>
    %22 = vector.shape_cast %21 : vector<1x128x128xf32> to vector<128x128xf32>
    %cst_17 = arith.constant dense<0.000000e+00> : vector<8x128xf32>
    %23 = tpu.matmul %20, %22, %cst_17 {dimension_numbers = #tpu.dot_dimension_numbers<[1], [0], [0], [1], [0, 0, 1, 1], [], []>} : vector<8x128xf32>, vector<128x128xf32>, vector<8x128xf32> -> vector<8x128xf32>
    %c2_18 = arith.constant 2 : index
    %c0_19 = arith.constant 0 : index
    %c0_20 = arith.constant 0 : index
    %24 = vector.load %arg3[%c2_18, %c0_19, %c0_20] : memref<4x1x128xf32, #tpu.memory_space<vmem>>, vector<1x1x128xf32>
    %25 = vector.shape_cast %24 : vector<1x1x128xf32> to vector<1x128xf32>
    %26 = vector.broadcast %25 : vector<1x128xf32> to vector<8x128xf32>
    %27 = arith.addf %23, %26 : vector<8x128xf32>
    %cst_21 = arith.constant 0.000000e+00 : f32
    %28 = vector.broadcast %cst_21 : f32 to vector<8x128xf32>
    %29 = arith.cmpf ogt, %27, %28 : vector<8x128xf32>
    %cst_22 = arith.constant 0.00999999977 : f32
    %30 = vector.broadcast %cst_22 : f32 to vector<8x128xf32>
    %31 = arith.mulf %30, %27 : vector<8x128xf32>
    %32 = arith.select %29, %27, %31 : vector<8x128xi1>, vector<8x128xf32>
    %c3 = arith.constant 3 : index
    %c0_23 = arith.constant 0 : index
    %c0_24 = arith.constant 0 : index
    %33 = vector.load %arg2[%c3, %c0_23, %c0_24] : memref<4x128x128xf32, #tpu.memory_space<vmem>>, vector<1x128x128xf32>
    %34 = vector.shape_cast %33 : vector<1x128x128xf32> to vector<128x128xf32>
    %cst_25 = arith.constant dense<0.000000e+00> : vector<8x128xf32>
    %35 = tpu.matmul %32, %34, %cst_25 {dimension_numbers = #tpu.dot_dimension_numbers<[1], [0], [0], [1], [0, 0, 1, 1], [], []>} : vector<8x128xf32>, vector<128x128xf32>, vector<8x128xf32> -> vector<8x128xf32>
    %c3_26 = arith.constant 3 : index
    %c0_27 = arith.constant 0 : index
    %c0_28 = arith.constant 0 : index
    %36 = vector.load %arg3[%c3_26, %c0_27, %c0_28] : memref<4x1x128xf32, #tpu.memory_space<vmem>>, vector<1x1x128xf32>
    %37 = vector.shape_cast %36 : vector<1x1x128xf32> to vector<1x128xf32>
    %38 = vector.broadcast %37 : vector<1x128xf32> to vector<8x128xf32>
    %39 = arith.addf %35, %38 : vector<8x128xf32>
    %c0_29 = arith.constant 0 : index
    %c0_30 = arith.constant 0 : index
    %40 = vector.load %arg4[%c0_29, %c0_30] : memref<8x128xf32, #tpu.memory_space<vmem>>, vector<8x128xf32>
    tpu.vector_store %arg4[%c0_29, %c0_30], %39 {strides = array<i32>} : memref<8x128xf32, #tpu.memory_space<vmem>>, vector<8x128xf32>,
    return
  }
  func.func @transform_0(%arg0: i32) -> (i32, i32) {
    %c0_i32 = arith.constant 0 : i32
    %c0_i32_0 = arith.constant 0 : i32
    return %arg0, %c0_i32 : i32, i32
  }
  func.func @transform_1(%arg0: i32) -> (i32, i32, i32) {
    %c0_i32 = arith.constant 0 : i32
    %c0_i32_0 = arith.constant 0 : i32
    %c0_i32_1 = arith.constant 0 : i32
    %c0_i32_2 = arith.constant 0 : i32
    return %c0_i32, %c0_i32_0, %c0_i32_1 : i32, i32, i32
  }
  func.func @transform_2(%arg0: i32) -> (i32, i32, i32) {
    %c0_i32 = arith.constant 0 : i32
    %c0_i32_0 = arith.constant 0 : i32
    %c0_i32_1 = arith.constant 0 : i32
    %c0_i32_2 = arith.constant 0 : i32
    return %c0_i32, %c0_i32_0, %c0_i32_1 : i32, i32, i32
  }
  func.func @transform_3(%arg0: i32) -> (i32, i32) {
    %c0_i32 = arith.constant 0 : i32
    %c0_i32_0 = arith.constant 0 : i32
    return %arg0, %c0_i32 : i32, i32
  }
}

</mosaic_0001>

<llo_original>
// kernel: tpu_custom_call.1
$region0: #{tpu_custom_call.1}
  #allocation0 [shape = 'u32[]', space=smem, size = 0x4, offset = 0x4, fixed_abs, tag = 'smem constant byte address 0x4 - core index']
  #allocation1 [shape = 'u32[144,128]{1,0:T(1,128)}', space=vmem, size = 0x12000, scoped, tag = 'internal scratch']
  %s0 = inlined_call_operand.hbm [shape: f32[8,128], index: 0, kind: input, shape index: {}]
  %s1 = inlined_call_operand.hbm [shape: f32[4,128,128], index: 1, kind: input, shape index: {}]
  %s2 = inlined_call_operand.vmem [shape: f32[4,1,128], index: 2, kind: input, shape index: {}]
  %s3 = inlined_call_operand.hbm [shape: f32[8,128], index: 3, kind: output, shape index: {}]
  %s4 = sld [smem:[#allocation0]]
  $region30: #{tpu_custom_call.1} parent=0
    _
  %s6 = ssub.s32 1, %s4
  %s7 = scalar_select 0, %s6, %s4
  $region1: #{tpu_custom_call.1} parent=0
    #allocation2 [shape = 'u8[4096]{0}', space=vmem, size = 0x1000, scoped, tag = 'input window, operand 0, single buffered']
    #allocation3 [shape = 's32[1]{0}', space=sflag, size = 0x4, scoped, tag = 'scoped memory for tpu_custom_call.1']
    #allocation4 [shape = 's32[1]{0}', space=sflag, size = 0x4, scoped, tag = 'scoped memory for tpu_custom_call.1']
    #allocation5 [shape = 'u8[262144]{0}', space=vmem, size = 0x40000, scoped, tag = 'input window, operand 1, single buffered']
    #allocation6 [shape = 's32[1]{0}', space=sflag, size = 0x4, scoped, tag = 'scoped memory for tpu_custom_call.1']
    #allocation7 [shape = 'u8[4096]{0}', space=vmem, size = 0x1000, scoped, tag = 'output window, operand 0, single buffered']
    %8 = vsyncpa [#allocation3], 0
    %9 = vsyncpa [#allocation6], 0
    %10 = vsyncpa [#allocation4], 0
    // Predicated region
    $region2: #{tpu_custom_call.1} parent=1 // pred_check
      _
    $region3: #{tpu_custom_call.1} parent=1 // pred_check_branch
      %12 = sbr.rel (0) target = $region5
    $region4: #{tpu_custom_call.1} parent=1 // pred_region
      %s14 = ssub.s32 128, 128
      %15 = vsyncadd [#allocation3], %s14
      %s17 = sshll.u32 [#allocation2], 4
      %s18 = int_to_ptr.vmem [resolvable:$true] %s17
      %20 = dma.hbm_to_vmem [thread:$0]  %s0, 128, %s18, [#allocation3]
    $region5: #{tpu_custom_call.1} parent=1 // pred_fallthru
      _
    // Predicated region
    $region6: #{tpu_custom_call.1} parent=1 // pred_check
      _
    $region7: #{tpu_custom_call.1} parent=1 // pred_check_branch
      %22 = sbr.rel (0) target = $region9
    $region8: #{tpu_custom_call.1} parent=1 // pred_region
      %s24 = ssub.s32 8192, 8192
      %25 = vsyncadd [#allocation6], %s24
      %s26 = sshll.u32 [#allocation5], 4
      %s27 = int_to_ptr.vmem [resolvable:$true] %s26
      %32 = dma.hbm_to_vmem [thread:$0]  %s1, 8192, %s27, [#allocation6], 128, 128, 8
    $region9: #{tpu_custom_call.1} parent=1 // pred_fallthru
      _
    // Predicated region
    $region10: #{tpu_custom_call.1} parent=1 // pred_check
      _
    $region11: #{tpu_custom_call.1} parent=1 // pred_check_branch
      %34 = sbr.rel (0) target = $region13
    $region12: #{tpu_custom_call.1} parent=1 // pred_region
      _
    $region13: #{tpu_custom_call.1} parent=1 // pred_fallthru
      _
    // Predicated region
    $region14: #{tpu_custom_call.1} parent=1 // pred_check
      _
    $region15: #{tpu_custom_call.1} parent=1 // pred_check_branch
      %36 = sbr.rel (0) target = $region17
    $region16: #{tpu_custom_call.1} parent=1 // pred_region
      %37 = dma.done [#allocation3], 128
    $region17: #{tpu_custom_call.1} parent=1 // pred_fallthru
      _
    // Predicated region
    $region18: #{tpu_custom_call.1} parent=1 // pred_check
      _
    $region19: #{tpu_custom_call.1} parent=1 // pred_check_branch
      %39 = sbr.rel (0) target = $region21
    $region20: #{tpu_custom_call.1} parent=1 // pred_region
      %40 = dma.done [#allocation6], 8192
    $region21: #{tpu_custom_call.1} parent=1 // pred_fallthru
      _
    %v41 = vld [vmem:[#allocation2] sm:$0xff]
    %v42 = vld [vmem:[#allocation5] sm:$0xff]
    %v43 = vld [vmem:[#allocation5 + $0x8] sm:$0xff]
    %v44 = vld [vmem:[#allocation5 + $0x10] sm:$0xff]
    %v45 = vld [vmem:[#allocation5 + $0x18] sm:$0xff]
    %v46 = vld [vmem:[#allocation5 + $0x20] sm:$0xff]
    %v47 = vld [vmem:[#allocation5 + $0x28] sm:$0xff]
    %v48 = vld [vmem:[#allocation5 + $0x30] sm:$0xff]
    %v49 = vld [vmem:[#allocation5 + $0x38] sm:$0xff]
    %v50 = vld [vmem:[#allocation5 + $0x40] sm:$0xff]
    %v51 = vld [vmem:[#allocation5 + $0x48] sm:$0xff]
    %v52 = vld [vmem:[#allocation5 + $0x50] sm:$0xff]
    %v53 = vld [vmem:[#allocation5 + $0x58] sm:$0xff]
    %v54 = vld [vmem:[#allocation5 + $0x60] sm:$0xff]
    %v55 = vld [vmem:[#allocation5 + $0x68] sm:$0xff]
    %v56 = vld [vmem:[#allocation5 + $0x70] sm:$0xff]
    %v57 = vld [vmem:[#allocation5 + $0x78] sm:$0xff]
    %v58 = vld [vmem:[%s2] sm:$0x1]
    %v60 = vlaneseq
    %v61 = vshrl.u32 %v60, 7
    %v62 = vsub.s32 0, %v61
    %v63 = vrot.slane %v58, %v62
    %65 = vmatprep.subr.mxu0 0.0
    %66 = vmatpush1.msra.mxu0 %v42
    %67 = vmatprep.subr.mxu0 0.0
    %68 = vmatpush1.msra.mxu0 %v43
    %69 = vmatprep.subr.mxu0 0.0
    %70 = vmatpush1.msra.mxu0 %v44
    %71 = vmatprep.subr.mxu0 0.0
    %72 = vmatpush1.msra.mxu0 %v45
    %73 = vmatprep.subr.mxu0 0.0
    %74 = vmatpush1.msra.mxu0 %v46
    %75 = vmatprep.subr.mxu0 0.0
    %76 = vmatpush1.msra.mxu0 %v47
    %77 = vmatprep.subr.mxu0 0.0
    %78 = vmatpush1.msra.mxu0 %v48
    %79 = vmatprep.subr.mxu0 0.0
    %80 = vmatpush1.msra.mxu0 %v49
    %81 = vmatprep.subr.mxu0 0.0
    %82 = vmatpush1.msra.mxu0 %v50
    %83 = vmatprep.subr.mxu0 0.0
    %84 = vmatpush1.msra.mxu0 %v51
    %85 = vmatprep.subr.mxu0 0.0
    %86 = vmatpush1.msra.mxu0 %v52
    %87 = vmatprep.subr.mxu0 0.0
    %88 = vmatpush1.msra.mxu0 %v53
    %89 = vmatprep.subr.mxu0 0.0
    %90 = vmatpush1.msra.mxu0 %v54
    %91 = vmatprep.subr.mxu0 0.0
    %92 = vmatpush1.msra.mxu0 %v55
    %93 = vmatprep.subr.mxu0 0.0
    %94 = vmatpush1.msra.mxu0 %v56
    %95 = vmatprep.subr.mxu0 0.0
    %96 = vmatpush1.msra.mxu0 %v57
    %97 = vmatprep.subr.mxu0 0.0
    %98 = vmatpush1.msra.mxu0 0.0
    %99 = vmatprep.subr.mxu0 0.0
    %100 = vmatpush1.msra.mxu0 0.0
    %101 = vmatprep.subr.mxu0 0.0
    %102 = vmatpush1.msra.mxu0 0.0
    %103 = vmatprep.subr.mxu0 0.0
    %104 = vmatpush1.msra.mxu0 0.0
    %105 = vmatprep.subr.mxu0 0.0
    %106 = vmatpush1.msra.mxu0 0.0
    %107 = vmatprep.subr.mxu0 0.0
    %108 = vmatpush1.msra.mxu0 0.0
    %109 = vmatprep.subr.mxu0 0.0
    %110 = vmatpush1.msra.mxu0 0.0
    %111 = vmatprep.subr.mxu0 0.0
    %112 = vmatpush1.msra.mxu0 0.0
    %113 = vmatprep.subr.mxu0 0.0
    %114 = vmatpush1.msra.mxu0 0.0
    %115 = vmatprep.subr.mxu0 0.0
    %116 = vmatpush1.msra.mxu0 0.0
    %117 = vmatprep.subr.mxu0 0.0
    %118 = vmatpush1.msra.mxu0 0.0
    %119 = vmatprep.subr.mxu0 0.0
    %120 = vmatpush1.msra.mxu0 0.0
    %121 = vmatprep.subr.mxu0 0.0
    %122 = vmatpush1.msra.mxu0 0.0
    %123 = vmatprep.subr.mxu0 0.0
    %124 = vmatpush1.msra.mxu0 0.0
    %125 = vmatprep.subr.mxu0 0.0
    %126 = vmatpush1.msra.mxu0 0.0
    %127 = vmatprep.subr.mxu0 0.0
    %128 = vmatpush1.msra.mxu0 0.0
    %129 = vmatprep.mubr.f32.mxu0 0.0
    %130 = vmatmul.mubr.f32.gmra.mrb[0].mxu0 %v41
    %v131 = vpop.f32.mrb[0].mxu0
    %v132 = vadd.f32 %v63, %v131
    %v133 = vpop.f32.mrb[0].mxu0
    %134 = vdwg.mxu0
    %v135 = vtanh.pop %v132
    %s136 = scalar_lea.vmem [#allocation5], 128
    %v137 = vld [vmem:[%s136] sm:$0xff]
    %v138 = vld [vmem:[%s136 + $0x8] sm:$0xff]
    %v139 = vld [vmem:[%s136 + $0x10] sm:$0xff]
    %v140 = vld [vmem:[%s136 + $0x18] sm:$0xff]
    %v141 = vld [vmem:[%s136 + $0x20] sm:$0xff]
    %v142 = vld [vmem:[%s136 + $0x28] sm:$0xff]
    %v143 = vld [vmem:[%s136 + $0x30] sm:$0xff]
    %v144 = vld [vmem:[%s136 + $0x38] sm:$0xff]
    %v145 = vld [vmem:[%s136 + $0x40] sm:$0xff]
    %v146 = vld [vmem:[%s136 + $0x48] sm:$0xff]
    %v147 = vld [vmem:[%s136 + $0x50] sm:$0xff]
    %v148 = vld [vmem:[%s136 + $0x58] sm:$0xff]
    %v149 = vld [vmem:[%s136 + $0x60] sm:$0xff]
    %v150 = vld [vmem:[%s136 + $0x68] sm:$0xff]
    %v151 = vld [vmem:[%s136 + $0x70] sm:$0xff]
    %v152 = vld [vmem:[%s136 + $0x78] sm:$0xff]
    %s153 = scalar_lea.vmem %s2, 1
    %v154 = vld [vmem:[%s153] sm:$0x1]
    %v156 = vlaneseq
    %v157 = vshrl.u32 %v156, 7
    %v158 = vsub.s32 0, %v157
    %v159 = vrot.slane %v154, %v158
    %161 = vmatprep.subr.mxu0 0.0
    %162 = vmatpush1.msra.mxu0 %v137
    %163 = vmatprep.subr.mxu0 0.0
    %164 = vmatpush1.msra.mxu0 %v138
    %165 = vmatprep.subr.mxu0 0.0
    %166 = vmatpush1.msra.mxu0 %v139
    %167 = vmatprep.subr.mxu0 0.0
    %168 = vmatpush1.msra.mxu0 %v140
    %169 = vmatprep.subr.mxu0 0.0
    %170 = vmatpush1.msra.mxu0 %v141
    %171 = vmatprep.subr.mxu0 0.0
    %172 = vmatpush1.msra.mxu0 %v142
    %173 = vmatprep.subr.mxu0 0.0
    %174 = vmatpush1.msra.mxu0 %v143
    %175 = vmatprep.subr.mxu0 0.0
    %176 = vmatpush1.msra.mxu0 %v144
    %177 = vmatprep.subr.mxu0 0.0
    %178 = vmatpush1.msra.mxu0 %v145
    %179 = vmatprep.subr.mxu0 0.0
    %180 = vmatpush1.msra.mxu0 %v146
    %181 = vmatprep.subr.mxu0 0.0
    %182 = vmatpush1.msra.mxu0 %v147
    %183 = vmatprep.subr.mxu0 0.0
    %184 = vmatpush1.msra.mxu0 %v148
    %185 = vmatprep.subr.mxu0 0.0
    %186 = vmatpush1.msra.mxu0 %v149
    %187 = vmatprep.subr.mxu0 0.0
    %188 = vmatpush1.msra.mxu0 %v150
    %189 = vmatprep.subr.mxu0 0.0
    %190 = vmatpush1.msra.mxu0 %v151
    %191 = vmatprep.subr.mxu0 0.0
    %192 = vmatpush1.msra.mxu0 %v152
    %193 = vmatprep.subr.mxu0 0.0
    %194 = vmatpush1.msra.mxu0 0.0
    %195 = vmatprep.subr.mxu0 0.0
    %196 = vmatpush1.msra.mxu0 0.0
    %197 = vmatprep.subr.mxu0 0.0
    %198 = vmatpush1.msra.mxu0 0.0
    %199 = vmatprep.subr.mxu0 0.0
    %200 = vmatpush1.msra.mxu0 0.0
    %201 = vmatprep.subr.mxu0 0.0
    %202 = vmatpush1.msra.mxu0 0.0
    %203 = vmatprep.subr.mxu0 0.0
    %204 = vmatpush1.msra.mxu0 0.0
    %205 = vmatprep.subr.mxu0 0.0
    %206 = vmatpush1.msra.mxu0 0.0
    %207 = vmatprep.subr.mxu0 0.0
    %208 = vmatpush1.msra.mxu0 0.0
    %209 = vmatprep.subr.mxu0 0.0
    %210 = vmatpush1.msra.mxu0 0.0
    %211 = vmatprep.subr.mxu0 0.0
    %212 = vmatpush1.msra.mxu0 0.0
    %213 = vmatprep.subr.mxu0 0.0
    %214 = vmatpush1.msra.mxu0 0.0
    %215 = vmatprep.subr.mxu0 0.0
    %216 = vmatpush1.msra.mxu0 0.0
    %217 = vmatprep.subr.mxu0 0.0
    %218 = vmatpush1.msra.mxu0 0.0
    %219 = vmatprep.subr.mxu0 0.0
    %220 = vmatpush1.msra.mxu0 0.0
    %221 = vmatprep.subr.mxu0 0.0
    %222 = vmatpush1.msra.mxu0 0.0
    %223 = vmatprep.subr.mxu0 0.0
    %224 = vmatpush1.msra.mxu0 0.0
    %225 = vmatprep.mubr.f32.mxu0 0.0
    %226 = vmatmul.mubr.f32.gmra.mrb[0].mxu0 %v135
    %v227 = vpop.f32.mrb[0].mxu0
    %v228 = vadd.f32 %v159, %v227
    %v229 = vpop.f32.mrb[0].mxu0
    %230 = vdwg.mxu0
    %vm231 = vcmp.gt.f32.partialorder %v228, 0.0
    %v232 = vmul.f32 %v228, 0.01
    %v233 = vsel %vm231, %v228, %v232
    %s234 = scalar_lea.vmem [#allocation5], 256
    %v235 = vld [vmem:[%s234] sm:$0xff]
    %v236 = vld [vmem:[%s234 + $0x8] sm:$0xff]
    %v237 = vld [vmem:[%s234 + $0x10] sm:$0xff]
    %v238 = vld [vmem:[%s234 + $0x18] sm:$0xff]
    %v239 = vld [vmem:[%s234 + $0x20] sm:$0xff]
    %v240 = vld [vmem:[%s234 + $0x28] sm:$0xff]
    %v241 = vld [vmem:[%s234 + $0x30] sm:$0xff]
    %v242 = vld [vmem:[%s234 + $0x38] sm:$0xff]
    %v243 = vld [vmem:[%s234 + $0x40] sm:$0xff]
    %v244 = vld [vmem:[%s234 + $0x48] sm:$0xff]
    %v245 = vld [vmem:[%s234 + $0x50] sm:$0xff]
    %v246 = vld [vmem:[%s234 + $0x58] sm:$0xff]
    %v247 = vld [vmem:[%s234 + $0x60] sm:$0xff]
    %v248 = vld [vmem:[%s234 + $0x68] sm:$0xff]
    %v249 = vld [vmem:[%s234 + $0x70] sm:$0xff]
    %v250 = vld [vmem:[%s234 + $0x78] sm:$0xff]
    %s251 = scalar_lea.vmem %s2, 2
    %v252 = vld [vmem:[%s251] sm:$0x1]
    %v254 = vlaneseq
    %v255 = vshrl.u32 %v254, 7
    %v256 = vsub.s32 0, %v255
    %v257 = vrot.slane %v252, %v256
    %259 = vmatprep.subr.mxu0 0.0
    %260 = vmatpush1.msra.mxu0 %v235
    %261 = vmatprep.subr.mxu0 0.0
    %262 = vmatpush1.msra.mxu0 %v236
    %263 = vmatprep.subr.mxu0 0.0
    %264 = vmatpush1.msra.mxu0 %v237
    %265 = vmatprep.subr.mxu0 0.0
    %266 = vmatpush1.msra.mxu0 %v238
    %267 = vmatprep.subr.mxu0 0.0
    %268 = vmatpush1.msra.mxu0 %v239
    %269 = vmatprep.subr.mxu0 0.0
    %270 = vmatpush1.msra.mxu0 %v240
    %271 = vmatprep.subr.mxu0 0.0
    %272 = vmatpush1.msra.mxu0 %v241
    %273 = vmatprep.subr.mxu0 0.0
    %274 = vmatpush1.msra.mxu0 %v242
    %275 = vmatprep.subr.mxu0 0.0
    %276 = vmatpush1.msra.mxu0 %v243
    %277 = vmatprep.subr.mxu0 0.0
    %278 = vmatpush1.msra.mxu0 %v244
    %279 = vmatprep.subr.mxu0 0.0
    %280 = vmatpush1.msra.mxu0 %v245
    %281 = vmatprep.subr.mxu0 0.0
    %282 = vmatpush1.msra.mxu0 %v246
    %283 = vmatprep.subr.mxu0 0.0
    %284 = vmatpush1.msra.mxu0 %v247
    %285 = vmatprep.subr.mxu0 0.0
    %286 = vmatpush1.msra.mxu0 %v248
    %287 = vmatprep.subr.mxu0 0.0
    %288 = vmatpush1.msra.mxu0 %v249
    %289 = vmatprep.subr.mxu0 0.0
    %290 = vmatpush1.msra.mxu0 %v250
    %291 = vmatprep.subr.mxu0 0.0
    %292 = vmatpush1.msra.mxu0 0.0
    %293 = vmatprep.subr.mxu0 0.0
    %294 = vmatpush1.msra.mxu0 0.0
    %295 = vmatprep.subr.mxu0 0.0
    %296 = vmatpush1.msra.mxu0 0.0
    %297 = vmatprep.subr.mxu0 0.0
    %298 = vmatpush1.msra.mxu0 0.0
    %299 = vmatprep.subr.mxu0 0.0
    %300 = vmatpush1.msra.mxu0 0.0
    %301 = vmatprep.subr.mxu0 0.0
    %302 = vmatpush1.msra.mxu0 0.0
    %303 = vmatprep.subr.mxu0 0.0
    %304 = vmatpush1.msra.mxu0 0.0
    %305 = vmatprep.subr.mxu0 0.0
    %306 = vmatpush1.msra.mxu0 0.0
    %307 = vmatprep.subr.mxu0 0.0
    %308 = vmatpush1.msra.mxu0 0.0
    %309 = vmatprep.subr.mxu0 0.0
    %310 = vmatpush1.msra.mxu0 0.0
    %311 = vmatprep.subr.mxu0 0.0
    %312 = vmatpush1.msra.mxu0 0.0
    %313 = vmatprep.subr.mxu0 0.0
    %314 = vmatpush1.msra.mxu0 0.0
    %315 = vmatprep.subr.mxu0 0.0
    %316 = vmatpush1.msra.mxu0 0.0
    %317 = vmatprep.subr.mxu0 0.0
    %318 = vmatpush1.msra.mxu0 0.0
    %319 = vmatprep.subr.mxu0 0.0
    %320 = vmatpush1.msra.mxu0 0.0
    %321 = vmatprep.subr.mxu0 0.0
    %322 = vmatpush1.msra.mxu0 0.0
    %323 = vmatprep.mubr.f32.mxu0 0.0
    %324 = vmatmul.mubr.f32.gmra.mrb[0].mxu0 %v233
    %v325 = vpop.f32.mrb[0].mxu0
    %v326 = vadd.f32 %v257, %v325
    %v327 = vpop.f32.mrb[0].mxu0
    %328 = vdwg.mxu0
    %vm329 = vcmp.gt.f32.partialorder %v326, 0.0
    %v330 = vmul.f32 %v326, 0.01
    %v331 = vsel %vm329, %v326, %v330
    %s332 = scalar_lea.vmem [#allocation5], 384
    %v333 = vld [vmem:[%s332] sm:$0xff]
    %v334 = vld [vmem:[%s332 + $0x8] sm:$0xff]
    %v335 = vld [vmem:[%s332 + $0x10] sm:$0xff]
    %v336 = vld [vmem:[%s332 + $0x18] sm:$0xff]
    %v337 = vld [vmem:[%s332 + $0x20] sm:$0xff]
    %v338 = vld [vmem:[%s332 + $0x28] sm:$0xff]
    %v339 = vld [vmem:[%s332 + $0x30] sm:$0xff]
    %v340 = vld [vmem:[%s332 + $0x38] sm:$0xff]
    %v341 = vld [vmem:[%s332 + $0x40] sm:$0xff]
    %v342 = vld [vmem:[%s332 + $0x48] sm:$0xff]
    %v343 = vld [vmem:[%s332 + $0x50] sm:$0xff]
    %v344 = vld [vmem:[%s332 + $0x58] sm:$0xff]
    %v345 = vld [vmem:[%s332 + $0x60] sm:$0xff]
    %v346 = vld [vmem:[%s332 + $0x68] sm:$0xff]
    %v347 = vld [vmem:[%s332 + $0x70] sm:$0xff]
    %v348 = vld [vmem:[%s332 + $0x78] sm:$0xff]
    %s349 = scalar_lea.vmem %s2, 3
    %v350 = vld [vmem:[%s349] sm:$0x1]
    %v352 = vlaneseq
    %v353 = vshrl.u32 %v352, 7
    %v354 = vsub.s32 0, %v353
    %v355 = vrot.slane %v350, %v354
    %357 = vmatprep.subr.mxu0 0.0
    %358 = vmatpush1.msra.mxu0 %v333
    %359 = vmatprep.subr.mxu0 0.0
    %360 = vmatpush1.msra.mxu0 %v334
    %361 = vmatprep.subr.mxu0 0.0
    %362 = vmatpush1.msra.mxu0 %v335
    %363 = vmatprep.subr.mxu0 0.0
    %364 = vmatpush1.msra.mxu0 %v336
    %365 = vmatprep.subr.mxu0 0.0
    %366 = vmatpush1.msra.mxu0 %v337
    %367 = vmatprep.subr.mxu0 0.0
    %368 = vmatpush1.msra.mxu0 %v338
    %369 = vmatprep.subr.mxu0 0.0
    %370 = vmatpush1.msra.mxu0 %v339
    %371 = vmatprep.subr.mxu0 0.0
    %372 = vmatpush1.msra.mxu0 %v340
    %373 = vmatprep.subr.mxu0 0.0
    %374 = vmatpush1.msra.mxu0 %v341
    %375 = vmatprep.subr.mxu0 0.0
    %376 = vmatpush1.msra.mxu0 %v342
    %377 = vmatprep.subr.mxu0 0.0
    %378 = vmatpush1.msra.mxu0 %v343
    %379 = vmatprep.subr.mxu0 0.0
    %380 = vmatpush1.msra.mxu0 %v344
    %381 = vmatprep.subr.mxu0 0.0
    %382 = vmatpush1.msra.mxu0 %v345
    %383 = vmatprep.subr.mxu0 0.0
    %384 = vmatpush1.msra.mxu0 %v346
    %385 = vmatprep.subr.mxu0 0.0
    %386 = vmatpush1.msra.mxu0 %v347
    %387 = vmatprep.subr.mxu0 0.0
    %388 = vmatpush1.msra.mxu0 %v348
    %389 = vmatprep.subr.mxu0 0.0
    %390 = vmatpush1.msra.mxu0 0.0
    %391 = vmatprep.subr.mxu0 0.0
    %392 = vmatpush1.msra.mxu0 0.0
    %393 = vmatprep.subr.mxu0 0.0
    %394 = vmatpush1.msra.mxu0 0.0
    %395 = vmatprep.subr.mxu0 0.0
    %396 = vmatpush1.msra.mxu0 0.0
    %397 = vmatprep.subr.mxu0 0.0
    %398 = vmatpush1.msra.mxu0 0.0
    %399 = vmatprep.subr.mxu0 0.0
    %400 = vmatpush1.msra.mxu0 0.0
    %401 = vmatprep.subr.mxu0 0.0
    %402 = vmatpush1.msra.mxu0 0.0
    %403 = vmatprep.subr.mxu0 0.0
    %404 = vmatpush1.msra.mxu0 0.0
    %405 = vmatprep.subr.mxu0 0.0
    %406 = vmatpush1.msra.mxu0 0.0
    %407 = vmatprep.subr.mxu0 0.0
    %408 = vmatpush1.msra.mxu0 0.0
    %409 = vmatprep.subr.mxu0 0.0
    %410 = vmatpush1.msra.mxu0 0.0
    %411 = vmatprep.subr.mxu0 0.0
    %412 = vmatpush1.msra.mxu0 0.0
    %413 = vmatprep.subr.mxu0 0.0
    %414 = vmatpush1.msra.mxu0 0.0
    %415 = vmatprep.subr.mxu0 0.0
    %416 = vmatpush1.msra.mxu0 0.0
    %417 = vmatprep.subr.mxu0 0.0
    %418 = vmatpush1.msra.mxu0 0.0
    %419 = vmatprep.subr.mxu0 0.0
    %420 = vmatpush1.msra.mxu0 0.0
    %421 = vmatprep.mubr.f32.mxu0 0.0
    %422 = vmatmul.mubr.f32.gmra.mrb[0].mxu0 %v331
    %v423 = vpop.f32.mrb[0].mxu0
    %v424 = vadd.f32 %v355, %v423
    %v425 = vpop.f32.mrb[0].mxu0
    %426 = vdwg.mxu0
    %427 = vst [vmem:[#allocation7] sm:$0xff] %v424
    // Predicated region
    $region22: #{tpu_custom_call.1} parent=1 // pred_check
      _
    $region23: #{tpu_custom_call.1} parent=1 // pred_check_branch
      %429 = sbr.rel (0) target = $region25
    $region24: #{tpu_custom_call.1} parent=1 // pred_region
      %s431 = ssub.s32 128, 128
      %432 = vsyncadd [#allocation4], %s431
      %s434 = sshll.u32 [#allocation7], 4
      %s435 = int_to_ptr.vmem [resolvable:$true] %s434
      %437 = dma.vmem_to_hbm [thread:$0]  %s435, 128, %s3, [#allocation4]
    $region25: #{tpu_custom_call.1} parent=1 // pred_fallthru
      _
    // Predicated region
    $region26: #{tpu_custom_call.1} parent=1 // pred_check
      _
    $region27: #{tpu_custom_call.1} parent=1 // pred_check_branch
      %439 = sbr.rel (0) target = $region29
    $region28: #{tpu_custom_call.1} parent=1 // pred_region
      %440 = dma.done [#allocation4], 128
    $region29: #{tpu_custom_call.1} parent=1 // pred_fallthru
      _
    %441 = vsyncpa [#allocation3], 1
    %442 = vsyncpa [#allocation6], 1
    %443 = vsyncpa [#allocation4], 1

</llo_original>
